<compile_context>
chip_gen: v7x
topology: tpu7x:2x2x1
jax: 0.10.0
libtpu: 0.0.40
codegen_flags: <defaults>
</compile_context>

<pallas_src>
import functools

import jax
import jax.numpy as jnp
from jax.experimental import pallas as pl
from jax.experimental.pallas import tpu as pltpu


# ----------------------------------------------------------------------------
# Pallas kernels
# ----------------------------------------------------------------------------
def _downsample_conv_kernel(e_ref, o_ref, h_ref, w_ref, b_ref, out_ref):
    """Fused stride-2 3x3 conv for one (sample, output-row-tile) block.

    e_ref:   (1, TH*Wo, 3C)  even input rows (ky=0 taps; rows 1.. also give ky=2), bf16
    o_ref:   (1, TH*Wo, 3C)  odd  input rows (ky=1 taps), bf16
    h_ref:   (1, 1, Wo, 3C)  halo even row: ky=2 tap of the tile's last output row, bf16
    w_ref:   (3, 3C, Cout)   weight slabs for row taps ky = 0, 1, 2 (rows = kx*C + c), bf16
    b_ref:   (1, Cout)       bias, f32
    out_ref: (1, TH*Wo, Cout)
    """
    m = out_ref.shape[1]          # TH * Wo
    wo = h_ref.shape[2]           # Wo
    mm = m - wo                   # (TH - 1) * Wo : rows whose ky=2 tap is resident

    bias = b_ref[...].astype(jnp.float32)                      # (1, Cout)

    # ky = 0 (even rows 2*ho) and ky = 1 (odd rows 2*ho+1): full tile, two MXU dots.
    acc = jnp.dot(e_ref[0], w_ref[0], preferred_element_type=jnp.float32)
    acc = acc + jnp.dot(o_ref[0], w_ref[1], preferred_element_type=jnp.float32)
    acc = acc + bias                                            # (m, Cout) f32

    # ky = 2 (even rows 2*ho+2): for all but the last output row of the tile the
    # tap is simply the resident even block shifted by one row (= Wo flattened
    # positions); the last output row's tap is the 1-row halo input.
    if mm > 0:
        hi = jnp.dot(e_ref[0, wo:, :], w_ref[2],
                     preferred_element_type=jnp.float32)        # (mm, Cout)
        out_ref[0, :mm, :] = (acc[:mm] + hi).astype(out_ref.dtype)
    hi_last = jnp.dot(h_ref[0, 0], w_ref[2],
                      preferred_element_type=jnp.float32)       # (Wo, Cout)
    out_ref[0, mm:, :] = (acc[mm:] + hi_last).astype(out_ref.dtype)


def _avgpool2x2_kernel(x_ref, q_ref, out_ref):
    """2x2 / stride-2 average pool for one (sample, row-tile) block, NCHW layout.

    x_ref:   (1, C, TH, 2W)  row pair [x[2*ho], x[2*ho+1]] concatenated on lanes
    q_ref:   (2W, Wo)        column-pair selection matrix (exact f32)
    out_ref: (1, C, TH, Wo)
    """
    c, th, w2 = x_ref.shape[1], x_ref.shape[2], x_ref.shape[3]
    wo = out_ref.shape[3]
    x = x_ref[0].astype(jnp.float32).reshape(c * th, w2)
    pooled = jnp.dot(x, q_ref[...], precision=jax.lax.Precision.HIGHEST,
                     preferred_element_type=jnp.float32) * 0.25
    out_ref[0] = pooled.reshape(c, th, wo).astype(out_ref.dtype)


# ----------------------------------------------------------------------------
# Tile / VMEM sizing helpers
# ----------------------------------------------------------------------------
def _pick_row_tile(ho, wo, target_m=512, prefer_multi=False):
    """Divisor TH of Ho with TH*Wo % 8 == 0 (or TH == Ho), TH*Wo ~ target_m."""
    cands = [d for d in range(1, ho + 1)
             if ho % d == 0 and ((d * wo) % 8 == 0 or d == ho)]
    if prefer_multi and ho > 1:
        multi = [d for d in cands if d < ho]    # keep >= 2 row tiles (megacore)
        if multi:
            cands = multi
    return min(cands, key=lambda d: (abs(d * wo - target_m), d))


def _pick_pool_row_tile(ho, c, w, itemsize, budget_bytes=8 << 20):
    """Divisor TH of Ho with TH % 8 == 0 (or TH == Ho) whose block fits the budget."""
    cands = [d for d in range(1, ho + 1)
             if ho % d == 0 and (d % 8 == 0 or d == ho)]
    fitting = [d for d in cands if c * d * 2 * w * itemsize <= budget_bytes]
    return max(fitting) if fitting else min(cands)


def _vmem_limit(working_set_bytes):
    # Double the working-set estimate for headroom; stay within [32, 64] MiB so
    # the same setting is safe on v5e/v6e (128 MiB) and v7x (64 MiB / TC).
    return int(min(64 << 20, max(32 << 20, 2 * working_set_bytes)))


# ----------------------------------------------------------------------------
# Wrappers
# ----------------------------------------------------------------------------
def downsample_conv(x_nchw, w, b, *, target_m=512, out_dtype=None):
    """Downsample(use_conv=True): Conv2d(C -> Cout, k=3, stride=2, padding=1)."""
    N, C, H, W = x_nchw.shape
    Cout = w.shape[0]
    assert w.shape == (Cout, C, 3, 3)
    assert H % 2 == 0 and W % 2 == 0, "even spatial dims only"
    Ho, Wo = H // 2, W // 2
    out_dtype = out_dtype or x_nchw.dtype
    TH = _pick_row_tile(Ho, Wo, target_m=target_m, prefer_multi=(N == 1))
    nT = Ho // TH

    # ---- glue (plain JAX, minimal passes) --------------------------------
    # bf16 cast fused into the NCHW->NHWC transpose, then pad by 1.
    x_nhwc = jnp.transpose(x_nchw, (0, 2, 3, 1)).astype(jnp.bfloat16)
    xpad = jnp.pad(x_nhwc, ((0, 0), (1, 1), (1, 1), (0, 0)))      # (N, H+2, W+2, C)

    even = xpad[:, 0::2]                                          # (N, Ho+1, W+2, C)
    odd = xpad[:, 1::2][:, :Ho]                                   # (N, Ho,   W+2, C)

    def pack_cols(rows):
        # pack the 3 column taps (kx = 0,1,2) of the stride-2 window on lanes
        return jnp.concatenate(
            [rows[:, :, kx:kx + 2 * Wo:2, :] for kx in range(3)], axis=-1)

    # ky=0 / ky=1 taps, flattened to (N, Ho*Wo, 3C) so kernel blocks are views.
    e_cat = pack_cols(even[:, :Ho]).reshape(N, Ho * Wo, 3 * C)
    o_cat = pack_cols(odd).reshape(N, Ho * Wo, 3 * C)
    # 1-row halo per tile: even row (t+1)*TH (ky=2 tap of the tile's last row).
    halo = pack_cols(even[:, TH::TH])                             # (N, nT, Wo, 3C)

    # weights: (Cout, C, 3, 3) -> 3 slabs (3C, Cout); row ordering kx*C + c
    # matches the lane packing above.
    w_bf = w.astype(jnp.bfloat16)
    w_slabs = jnp.stack(
        [jnp.concatenate([w_bf[:, :, ky, kx].T for kx in range(3)], axis=0)
         for ky in (0, 1, 2)], axis=0)                            # (3, 3C, Cout)
    b2 = b.reshape(1, Cout).astype(jnp.float32)

    out_isz = jnp.dtype(out_dtype).itemsize
    ws = (2 * (2 * TH * Wo * 3 * C * 2 + Wo * 3 * C * 2)          # dbl-buffered bf16 inputs
          + 2 * TH * Wo * Cout * out_isz                          # dbl-buffered output
          + 3 * 3 * C * Cout * 2 + 4 * Cout                       # weights + bias
          + 2 * TH * Wo * Cout * 4)                               # f32 accumulators

    out_flat = pl.pallas_call(
        _downsample_conv_kernel,
        out_shape=jax.ShapeDtypeStruct((N, Ho * Wo, Cout), out_dtype),
        grid=(N, nT),
        in_specs=[
            pl.BlockSpec((1, TH * Wo, 3 * C), lambda n, t: (n, t, 0)),
            pl.BlockSpec((1, TH * Wo, 3 * C), lambda n, t: (n, t, 0)),
            pl.BlockSpec((1, 1, Wo, 3 * C), lambda n, t: (n, t, 0, 0)),
            pl.BlockSpec((3, 3 * C, Cout), lambda n, t: (0, 0, 0)),
            pl.BlockSpec((1, Cout), lambda n, t: (0, 0)),
        ],
        out_specs=pl.BlockSpec((1, TH * Wo, Cout), lambda n, t: (n, t, 0)),
        compiler_params=pltpu.CompilerParams(
            dimension_semantics=("parallel", "parallel"),
            vmem_limit_bytes=_vmem_limit(ws)),
    )(e_cat, o_cat, halo, w_slabs, b2)

    out_nhwc = out_flat.reshape(N, Ho, Wo, Cout)                  # free reshape
    return jnp.transpose(out_nhwc, (0, 3, 1, 2))                  # NHWC -> NCHW


def downsample_avgpool(x_nchw):
    """Downsample(use_conv=False): AvgPool2d(kernel_size=2, stride=2), exact f32."""
    N, C, H, W = x_nchw.shape
    assert H % 2 == 0 and W % 2 == 0, "even spatial dims only"
    Ho, Wo = H // 2, W // 2
    isz = jnp.dtype(x_nchw.dtype).itemsize
    TH = _pick_pool_row_tile(Ho, C, W, isz)
    nT = Ho // TH

    # Free reshape: row ho of xr holds [input row 2*ho | input row 2*ho+1] on lanes.
    xr = x_nchw.reshape(N, C, Ho, 2 * W)
    # Column-pair selection matrix: q[k, j] = 1 iff (k % W) // 2 == j.
    q = jax.nn.one_hot((jnp.arange(2 * W) % W) // 2, Wo, dtype=jnp.float32)

    ws = 2 * (C * TH * 2 * W * isz) + 2 * (C * TH * Wo * isz) + 2 * W * Wo * 4 \
        + C * TH * max(2 * W, Wo) * 4

    out = pl.pallas_call(
        _avgpool2x2_kernel,
        out_shape=jax.ShapeDtypeStruct((N, C, Ho, Wo), x_nchw.dtype),
        grid=(N, nT),
        in_specs=[
            pl.BlockSpec((1, C, TH, 2 * W), lambda n, t: (n, 0, t, 0)),
            pl.BlockSpec((2 * W, Wo), lambda n, t: (0, 0)),
        ],
        out_specs=pl.BlockSpec((1, C, TH, Wo), lambda n, t: (n, 0, t, 0)),
        compiler_params=pltpu.CompilerParams(
            dimension_semantics=("parallel", "parallel"),
            vmem_limit_bytes=_vmem_limit(ws)),
    )(xr, q)
    return out


def downsample_forward(x_nchw, params, use_conv, out_dtype=None):
    if use_conv:
        return downsample_conv(x_nchw, params["conv_w"], params["conv_b"],
                               out_dtype=out_dtype)
    # module asserts channels == out_channels for the pooling branch
    return downsample_avgpool(x_nchw)


# ----------------------------------------------------------------------------
# Pure-JAX reference (mirrors the PyTorch module) for validation
# ----------------------------------------------------------------------------
def downsample_reference(x, params, use_conv):
    if use_conv:
        y = jax.lax.conv_general_dilated(
            x, params["conv_w"], window_strides=(2, 2),
            padding=[(1, 1), (1, 1)],
            dimension_numbers=("NCHW", "OIHW", "NCHW"),
            precision=jax.lax.Precision.HIGHEST)
        return y + params["conv_b"][None, :, None, None]
    s = jax.lax.reduce_window(x, 0.0, jax.lax.add,
                              (1, 1, 2, 2), (1, 1, 2, 2), "VALID")
    return s / 4.0


# ----------------------------------------------------------------------------
if __name__ == "__main__":
    N, C, H, W = 2, 64, 16, 16
    C_OUT = 64  # out_channels defaults to channels in the module

    key = jax.random.PRNGKey(0)
    k1, k2, k3 = jax.random.split(key, 3)
    params = {
        "conv_w": 0.1 * jax.random.normal(k1, (C_OUT, C, 3, 3), jnp.float32),
        "conv_b": 0.1 * jax.random.normal(k2, (C_OUT,), jnp.float32),
    }
    x = jax.random.normal(k3, (N, C, H, W), jnp.float32)

    conv_fn = jax.jit(functools.partial(downsample_forward, params=params,
                                        use_conv=True))
    pool_fn = jax.jit(functools.partial(downsample_forward, params=params,
                                        use_conv=False))

    out_conv = jax.block_until_ready(conv_fn(x))
    out_pool = jax.block_until_ready(pool_fn(x))

    ref_conv = downsample_reference(x, params, True)
    ref_pool = downsample_reference(x, params, False)

    assert out_conv.shape == (N, C_OUT, H // 2, W // 2), out_conv.shape
    assert out_pool.shape == (N, C, H // 2, W // 2), out_pool.shape
    # conv path uses bf16 MXU operands with f32 accumulation -> relaxed tolerance
    assert jnp.allclose(out_conv, ref_conv, rtol=5e-2, atol=5e-2), \
        float(jnp.max(jnp.abs(out_conv - ref_conv)))
    # pooling path is exact f32 (HIGHEST-precision matmul with a 0/1 matrix)
    assert jnp.allclose(out_pool, ref_pool, rtol=1e-4, atol=1e-4), \
        float(jnp.max(jnp.abs(out_pool - ref_pool)))

    print("KERNEL_OK")
</pallas_src>

<mosaic_0001>
module attributes {stable_mosaic.version = 11 : i64} {
  func.func @_downsample_conv_kernel(%arg0: i32, %arg1: i32, %arg2: memref<1x64x192xbf16, #tpu.memory_space<vmem>>, %arg3: memref<1x64x192xbf16, #tpu.memory_space<vmem>>, %arg4: memref<1x1x8x192xbf16, #tpu.memory_space<vmem>>, %arg5: memref<3x192x64xbf16, #tpu.memory_space<vmem>>, %arg6: memref<1x64xf32, #tpu.memory_space<vmem>>, %arg7: memref<1x64x64xf32, #tpu.memory_space<vmem>>) attributes {dimension_semantics = [#tpu.dimension_semantics<parallel>, #tpu.dimension_semantics<parallel>], iteration_bounds = array<i64: 2, 1>, scalar_prefetch = 0 : i64, scratch_operands = 0 : i64, tpu.core_type = #tpu.core_type<tc>, window_params = [{transform_indices = @transform_0, window_bounds = array<i64: 1, 64, 192>}, {transform_indices = @transform_1, window_bounds = array<i64: 1, 64, 192>}, {transform_indices = @transform_2, window_bounds = array<i64: 1, 1, 8, 192>}, {pipeline_mode = #tpu.pipeline_mode<synchronous>, transform_indices = @transform_3, window_bounds = array<i64: 3, 192, 64>}, {pipeline_mode = #tpu.pipeline_mode<synchronous>, transform_indices = @transform_4, window_bounds = array<i64: 1, 64>}, {transform_indices = @transform_5, window_bounds = array<i64: 1, 64, 64>}]} {
    %c0 = arith.constant 0 : index
    %c0_0 = arith.constant 0 : index
    %0 = vector.load %arg6[%c0, %c0_0] : memref<1x64xf32, #tpu.memory_space<vmem>>, vector<1x64xf32>
    %c0_1 = arith.constant 0 : index
    %c0_2 = arith.constant 0 : index
    %c0_3 = arith.constant 0 : index
    %1 = vector.load %arg2[%c0_1, %c0_2, %c0_3] : memref<1x64x192xbf16, #tpu.memory_space<vmem>>, vector<1x64x192xbf16>
    %2 = vector.shape_cast %1 : vector<1x64x192xbf16> to vector<64x192xbf16>
    %c0_4 = arith.constant 0 : index
    %c0_5 = arith.constant 0 : index
    %c0_6 = arith.constant 0 : index
    %3 = vector.load %arg5[%c0_4, %c0_5, %c0_6] : memref<3x192x64xbf16, #tpu.memory_space<vmem>>, vector<1x192x64xbf16>
    %4 = vector.shape_cast %3 : vector<1x192x64xbf16> to vector<192x64xbf16>
    %cst = arith.constant dense<0.000000e+00> : vector<64x64xf32>
    %5 = tpu.matmul %2, %4, %cst {dimension_numbers = #tpu.dot_dimension_numbers<[1], [0], [0], [1], [0, 0, 1, 1], [], []>} : vector<64x192xbf16>, vector<192x64xbf16>, vector<64x64xf32> -> vector<64x64xf32>
    %c0_7 = arith.constant 0 : index
    %c0_8 = arith.constant 0 : index
    %c0_9 = arith.constant 0 : index
    %6 = vector.load %arg3[%c0_7, %c0_8, %c0_9] : memref<1x64x192xbf16, #tpu.memory_space<vmem>>, vector<1x64x192xbf16>
    %7 = vector.shape_cast %6 : vector<1x64x192xbf16> to vector<64x192xbf16>
    %c1 = arith.constant 1 : index
    %c0_10 = arith.constant 0 : index
    %c0_11 = arith.constant 0 : index
    %8 = vector.load %arg5[%c1, %c0_10, %c0_11] : memref<3x192x64xbf16, #tpu.memory_space<vmem>>, vector<1x192x64xbf16>
    %9 = vector.shape_cast %8 : vector<1x192x64xbf16> to vector<192x64xbf16>
    %cst_12 = arith.constant dense<0.000000e+00> : vector<64x64xf32>
    %10 = tpu.matmul %7, %9, %cst_12 {dimension_numbers = #tpu.dot_dimension_numbers<[1], [0], [0], [1], [0, 0, 1, 1], [], []>} : vector<64x192xbf16>, vector<192x64xbf16>, vector<64x64xf32> -> vector<64x64xf32>
    %11 = arith.addf %5, %10 : vector<64x64xf32>
    %12 = vector.broadcast %0 : vector<1x64xf32> to vector<64x64xf32>
    %13 = arith.addf %11, %12 : vector<64x64xf32>
    %c0_13 = arith.constant 0 : index
    %c8 = arith.constant 8 : index
    %c0_14 = arith.constant 0 : index
    %14 = vector.load %arg2[%c0_13, %c8, %c0_14] : memref<1x64x192xbf16, #tpu.memory_space<vmem>>, vector<1x56x192xbf16>
    %15 = vector.shape_cast %14 : vector<1x56x192xbf16> to vector<56x192xbf16>
    %c2 = arith.constant 2 : index
    %c0_15 = arith.constant 0 : index
    %c0_16 = arith.constant 0 : index
    %16 = vector.load %arg5[%c2, %c0_15, %c0_16] : memref<3x192x64xbf16, #tpu.memory_space<vmem>>, vector<1x192x64xbf16>
    %17 = vector.shape_cast %16 : vector<1x192x64xbf16> to vector<192x64xbf16>
    %cst_17 = arith.constant dense<0.000000e+00> : vector<56x64xf32>
    %18 = tpu.matmul %15, %17, %cst_17 {dimension_numbers = #tpu.dot_dimension_numbers<[1], [0], [0], [1], [0, 0, 1, 1], [], []>} : vector<56x192xbf16>, vector<192x64xbf16>, vector<56x64xf32> -> vector<56x64xf32>
    %19 = vector.extract_strided_slice %13 {offsets = [0, 0], sizes = [56, 64], strides = [1, 1]} : vector<64x64xf32> to vector<56x64xf32>
    %20 = arith.addf %19, %18 : vector<56x64xf32>
    %c0_18 = arith.constant 0 : index
    %c0_19 = arith.constant 0 : index
    %c0_20 = arith.constant 0 : index
    %21 = vector.load %arg7[%c0_18, %c0_19, %c0_20] : memref<1x64x64xf32, #tpu.memory_space<vmem>>, vector<1x56x64xf32>
    %22 = vector.shape_cast %21 : vector<1x56x64xf32> to vector<56x64xf32>
    %23 = vector.shape_cast %20 : vector<56x64xf32> to vector<1x56x64xf32>
    tpu.vector_store %arg7[%c0_18, %c0_19, %c0_20], %23 {strides = array<i32>} : memref<1x64x64xf32, #tpu.memory_space<vmem>>, vector<1x56x64xf32>,
    %c0_21 = arith.constant 0 : index
    %c0_22 = arith.constant 0 : index
    %c0_23 = arith.constant 0 : index
    %c0_24 = arith.constant 0 : index
    %24 = vector.load %arg4[%c0_21, %c0_22, %c0_23, %c0_24] : memref<1x1x8x192xbf16, #tpu.memory_space<vmem>>, vector<1x1x8x192xbf16>
    %25 = vector.shape_cast %24 : vector<1x1x8x192xbf16> to vector<8x192xbf16>
    %c2_25 = arith.constant 2 : index
    %c0_26 = arith.constant 0 : index
    %c0_27 = arith.constant 0 : index
    %26 = vector.load %arg5[%c2_25, %c0_26, %c0_27] : memref<3x192x64xbf16, #tpu.memory_space<vmem>>, vector<1x192x64xbf16>
    %27 = vector.shape_cast %26 : vector<1x192x64xbf16> to vector<192x64xbf16>
    %cst_28 = arith.constant dense<0.000000e+00> : vector<8x64xf32>
    %28 = tpu.matmul %25, %27, %cst_28 {dimension_numbers = #tpu.dot_dimension_numbers<[1], [0], [0], [1], [0, 0, 1, 1], [], []>} : vector<8x192xbf16>, vector<192x64xbf16>, vector<8x64xf32> -> vector<8x64xf32>
    %29 = vector.extract_strided_slice %13 {offsets = [56, 0], sizes = [8, 64], strides = [1, 1]} : vector<64x64xf32> to vector<8x64xf32>
    %30 = arith.addf %29, %28 : vector<8x64xf32>
    %c0_29 = arith.constant 0 : index
    %c56 = arith.constant 56 : index
    %c0_30 = arith.constant 0 : index
    %31 = vector.load %arg7[%c0_29, %c56, %c0_30] : memref<1x64x64xf32, #tpu.memory_space<vmem>>, vector<1x8x64xf32>
    %32 = vector.shape_cast %31 : vector<1x8x64xf32> to vector<8x64xf32>
    %33 = vector.shape_cast %30 : vector<8x64xf32> to vector<1x8x64xf32>
    tpu.vector_store %arg7[%c0_29, %c56, %c0_30], %33 {strides = array<i32>} : memref<1x64x64xf32, #tpu.memory_space<vmem>>, vector<1x8x64xf32>,
    return
  }
  func.func @transform_0(%arg0: i32, %arg1: i32) -> (i32, i32, i32) {
    %c0_i32 = arith.constant 0 : i32
    %c0_i32_0 = arith.constant 0 : i32
    return %arg0, %arg1, %c0_i32 : i32, i32, i32
  }
  func.func @transform_1(%arg0: i32, %arg1: i32) -> (i32, i32, i32) {
    %c0_i32 = arith.constant 0 : i32
    %c0_i32_0 = arith.constant 0 : i32
    return %arg0, %arg1, %c0_i32 : i32, i32, i32
  }
  func.func @transform_2(%arg0: i32, %arg1: i32) -> (i32, i32, i32, i32) {
    %c0_i32 = arith.constant 0 : i32
    %c0_i32_0 = arith.constant 0 : i32
    %c0_i32_1 = arith.constant 0 : i32
    return %arg0, %arg1, %c0_i32, %c0_i32_0 : i32, i32, i32, i32
  }
  func.func @transform_3(%arg0: i32, %arg1: i32) -> (i32, i32, i32) {
    %c0_i32 = arith.constant 0 : i32
    %c0_i32_0 = arith.constant 0 : i32
    %c0_i32_1 = arith.constant 0 : i32
    %c0_i32_2 = arith.constant 0 : i32
    return %c0_i32, %c0_i32_0, %c0_i32_1 : i32, i32, i32
  }
  func.func @transform_4(%arg0: i32, %arg1: i32) -> (i32, i32) {
    %c0_i32 = arith.constant 0 : i32
    %c0_i32_0 = arith.constant 0 : i32
    %c0_i32_1 = arith.constant 0 : i32
    return %c0_i32, %c0_i32_0 : i32, i32
  }
  func.func @transform_5(%arg0: i32, %arg1: i32) -> (i32, i32, i32) {
    %c0_i32 = arith.constant 0 : i32
    %c0_i32_0 = arith.constant 0 : i32
    return %arg0, %arg1, %c0_i32 : i32, i32, i32
  }
}

</mosaic_0001>

<llo_original>
// kernel: downsample_forward.1
$region0: #{downsample_forward.1}
  #allocation0 [shape = 'u32[]', space=smem, size = 0x4, offset = 0x4, fixed_abs, tag = 'smem constant byte address 0x4 - core index']
  #allocation1 [shape = 'u32[144,128]{1,0:T(1,128)}', space=vmem, size = 0x12000, scoped, tag = 'internal scratch']
  %s0 = inlined_call_operand.vmem [shape: bf16[2,64,192], index: 0, kind: input, shape index: {}]
  %s1 = inlined_call_operand.vmem [shape: bf16[2,64,192], index: 1, kind: input, shape index: {}]
  %s2 = inlined_call_operand.vmem [shape: bf16[2,1,8,192], index: 2, kind: input, shape index: {}]
  %s3 = inlined_call_operand.vmem [shape: bf16[3,192,64], index: 3, kind: input, shape index: {}]
  %s4 = inlined_call_operand.vmem [shape: f32[1,64], index: 4, kind: input, shape index: {}]
  %s5 = inlined_call_operand.hbm [shape: f32[2,64,64], index: 5, kind: output, shape index: {}]
  %s6 = sld [smem:[#allocation0]]
  $region53: #{downsample_forward.1} parent=0
    _
  %s8 = ssub.s32 1, %s6
  %s9 = scalar_select 0, %s8, %s6
  $region1: #{downsample_forward.1} parent=0
    #allocation2 [shape = 'u8[65536]{0}', space=vmem, size = 0x10000, scoped, tag = 'output window, operand 0']
    #allocation3 [shape = 's32[2]{0}', space=sflag, size = 0x8, scoped, tag = 'scoped memory for downsample_forward.1']
    %10 = vsyncpa [#allocation3], 0
    %s11 = scalar_lea.sflag [#allocation3], 1
    %12 = vsyncpa %s11, 0
    loop: start=0, step=1, limit=4
    $region2: #{downsample_forward.1} parent=1 // loop_pre_header
      _
    $region3: #{downsample_forward.1} parent=1 // loop_header
      %s14 = sphi 0, %s18
      %p15 = scmp.ge.s32.totalorder %s14, 4
      %s21 = sphi 0, %s33
      %s22 = sphi 0, %s29
      %s23 = sphi 0, %s21
      %s24 = sphi 0, %s22
      %s25 = sphi 0, %s23
      %s26 = sphi 0, %s24
      %s38 = sphi 0, %s40
      %s41 = sphi 0, %s38
      %s42 = sphi 0, %s41
      %s58 = sphi 0, %s42
      %s66 = sphi 0, %s68
      %s69 = sphi 0, %s66
      %s70 = sphi 0, %s69
      %s86 = sphi 0, %s70
      %s94 = sphi 0, %s96
      %s97 = sphi 0, %s94
      %s98 = sphi 0, %s97
      %s114 = sphi 0, %s98
      %s118 = sphi 0, %s118
      %s120 = sphi 0, %s118
      %s121 = sphi 0, %s120
      %s135 = sphi 0, %s121
      %s139 = sphi 0, %s139
      %s141 = sphi 0, %s139
      %s142 = sphi 0, %s141
      %s156 = sphi 0, %s142
      %s164 = sphi 0, %s166
      %s167 = sphi 0, %s164
      %s168 = sphi 0, %s167
      %s184 = sphi 0, %s168
    $region4: #{downsample_forward.1} parent=1 // loop_header_branch
      %17 = sbr.rel (%p15) target = $region8
    $region5: #{downsample_forward.1} parent=1 // loop_body
      %s19 = ssub.s32 %s14, 1
      %s20 = ssub.s32 %s14, 2
      %s27 = sadd.s32 1, %s22
      %p28 = scmp.ge.s32.totalorder %s27, 1
      %s29 = scalar_select %p28, 0, %s27
      %s30 = sadd.s32 1, %s21
      %s31 = scalar_select %p28, %s30, %s21
      %p32 = scmp.ge.s32.totalorder %s31, 2
      %s33 = scalar_select %p32, 0, %s31
      %s34 = ssub.s32 %s21, %s33
      %s35 = ssub.s32 %s22, %s29
      %s36 = sor.u32 %s34, %s35
      %p37 = scmp.eq.s32.totalorder %s36, 0
      %s39 = sadd.s32 %s38, 1
      %s40 = scalar_select %p37, %s38, %s39
      %p43 = pneg %p37
      %p44 = scmp.eq.s32.totalorder %s14, 1
      %p45 = por %p43, %p44
      %p46 = scmp.ne.s32.totalorder %s38, %s41
      %p47 = scmp.eq.s32.totalorder %s14, 0
      %p48 = por %p46, %p47
      %p49 = scmp.ne.s32.totalorder %s38, %s41
      %p50 = scmp.eq.s32.totalorder %s19, 1
      %p51 = por %p49, %p50
      %p52 = scmp.ne.s32.totalorder %s41, %s42
      %p53 = scmp.eq.s32.totalorder %s19, 0
      %p54 = por %p52, %p53
      %p55 = scmp.ne.s32.totalorder %s41, %s42
      %p56 = scmp.eq.s32.totalorder %s20, 1
      %p57 = por %p55, %p56
      %p59 = scmp.ne.s32.totalorder %s42, %s58
      %p60 = scmp.eq.s32.totalorder %s20, 0
      %p61 = por %p59, %p60
      %s62 = ssub.s32 %s21, %s33
      %s63 = ssub.s32 %s22, %s29
      %s64 = sor.u32 %s62, %s63
      %p65 = scmp.eq.s32.totalorder %s64, 0
      %s67 = sadd.s32 %s66, 1
      %s68 = scalar_select %p65, %s66, %s67
      %p71 = pneg %p65
      %p72 = scmp.eq.s32.totalorder %s14, 1
      %p73 = por %p71, %p72
      %p74 = scmp.ne.s32.totalorder %s66, %s69
      %p75 = scmp.eq.s32.totalorder %s14, 0
      %p76 = por %p74, %p75
      %p77 = scmp.ne.s32.totalorder %s66, %s69
      %p78 = scmp.eq.s32.totalorder %s19, 1
      %p79 = por %p77, %p78
      %p80 = scmp.ne.s32.totalorder %s69, %s70
      %p81 = scmp.eq.s32.totalorder %s19, 0
      %p82 = por %p80, %p81
      %p83 = scmp.ne.s32.totalorder %s69, %s70
      %p84 = scmp.eq.s32.totalorder %s20, 1
      %p85 = por %p83, %p84
      %p87 = scmp.ne.s32.totalorder %s70, %s86
      %p88 = scmp.eq.s32.totalorder %s20, 0
      %p89 = por %p87, %p88
      %s90 = ssub.s32 %s21, %s33
      %s91 = ssub.s32 %s22, %s29
      %s92 = sor.u32 %s90, %s91
      %p93 = scmp.eq.s32.totalorder %s92, 0
      %s95 = sadd.s32 %s94, 1
      %s96 = scalar_select %p93, %s94, %s95
      %p99 = pneg %p93
      %p100 = scmp.eq.s32.totalorder %s14, 1
      %p101 = por %p99, %p100
      %p102 = scmp.ne.s32.totalorder %s94, %s97
      %p103 = scmp.eq.s32.totalorder %s14, 0
      %p104 = por %p102, %p103
      %p105 = scmp.ne.s32.totalorder %s94, %s97
      %p106 = scmp.eq.s32.totalorder %s19, 1
      %p107 = por %p105, %p106
      %p108 = scmp.ne.s32.totalorder %s97, %s98
      %p109 = scmp.eq.s32.totalorder %s19, 0
      %p110 = por %p108, %p109
      %p111 = scmp.ne.s32.totalorder %s97, %s98
      %p112 = scmp.eq.s32.totalorder %s20, 1
      %p113 = por %p111, %p112
      %p115 = scmp.ne.s32.totalorder %s98, %s114
      %p116 = scmp.eq.s32.totalorder %s20, 0
      %p117 = por %p115, %p116
      %s119 = sadd.s32 %s118, 1
      %p122 = scmp.eq.s32.totalorder %s14, 1
      %p123 = scmp.ne.s32.totalorder %s118, %s120
      %p124 = scmp.eq.s32.totalorder %s14, 0
      %p125 = por %p123, %p124
      %p126 = scmp.ne.s32.totalorder %s118, %s120
      %p127 = scmp.eq.s32.totalorder %s19, 1
      %p128 = por %p126, %p127
      %p129 = scmp.ne.s32.totalorder %s120, %s121
      %p130 = scmp.eq.s32.totalorder %s19, 0
      %p131 = por %p129, %p130
      %p132 = scmp.ne.s32.totalorder %s120, %s121
      %p133 = scmp.eq.s32.totalorder %s20, 1
      %p134 = por %p132, %p133
      %p136 = scmp.ne.s32.totalorder %s121, %s135
      %p137 = scmp.eq.s32.totalorder %s20, 0
      %p138 = por %p136, %p137
      %s140 = sadd.s32 %s139, 1
      %p143 = scmp.eq.s32.totalorder %s14, 1
      %p144 = scmp.ne.s32.totalorder %s139, %s141
      %p145 = scmp.eq.s32.totalorder %s14, 0
      %p146 = por %p144, %p145
      %p147 = scmp.ne.s32.totalorder %s139, %s141
      %p148 = scmp.eq.s32.totalorder %s19, 1
      %p149 = por %p147, %p148
      %p150 = scmp.ne.s32.totalorder %s141, %s142
      %p151 = scmp.eq.s32.totalorder %s19, 0
      %p152 = por %p150, %p151
      %p153 = scmp.ne.s32.totalorder %s141, %s142
      %p154 = scmp.eq.s32.totalorder %s20, 1
      %p155 = por %p153, %p154
      %p157 = scmp.ne.s32.totalorder %s142, %s156
      %p158 = scmp.eq.s32.totalorder %s20, 0
      %p159 = por %p157, %p158
      %s160 = ssub.s32 %s21, %s33
      %s161 = ssub.s32 %s22, %s29
      %s162 = sor.u32 %s160, %s161
      %p163 = scmp.eq.s32.totalorder %s162, 0
      %s165 = sadd.s32 %s164, 1
      %s166 = scalar_select %p163, %s164, %s165
      %p169 = pneg %p163
      %p170 = scmp.eq.s32.totalorder %s14, 1
      %p171 = por %p169, %p170
      %p172 = scmp.ne.s32.totalorder %s164, %s167
      %p173 = scmp.eq.s32.totalorder %s14, 0
      %p174 = por %p172, %p173
      %p175 = scmp.ne.s32.totalorder %s164, %s167
      %p176 = scmp.eq.s32.totalorder %s19, 1
      %p177 = por %p175, %p176
      %p178 = scmp.ne.s32.totalorder %s167, %s168
      %p179 = scmp.eq.s32.totalorder %s19, 0
      %p180 = por %p178, %p179
      %p181 = scmp.ne.s32.totalorder %s167, %s168
      %p182 = scmp.eq.s32.totalorder %s20, 1
      %p183 = por %p181, %p182
      %p185 = scmp.ne.s32.totalorder %s168, %s184
      %p186 = scmp.eq.s32.totalorder %s20, 0
      %p187 = por %p185, %p186
      %p188 = scmp.le.s32.totalorder 1, %s14
      %p189 = scmp.lt.s32.totalorder %s14, 3
      %p190 = pnand %p188, %p189
      %p191 = pneg %p190
      // Predicated region
      $region9: #{downsample_forward.1} parent=5 // pred_check
        _
      $region10: #{downsample_forward.1} parent=5 // pred_check_branch
        %193 = sbr.rel (%p190) target = $region12
      $region11: #{downsample_forward.1} parent=5 // pred_region
        %s194 = ssub.s32 %s14, 1
        // Predicated region
        $region13: #{downsample_forward.1} parent=11 // pred_check
          %p195 = pneg %p131
        $region14: #{downsample_forward.1} parent=11 // pred_check_branch
          %197 = sbr.rel (%p195) target = $region16
        $region15: #{downsample_forward.1} parent=11 // pred_region
          _
        $region16: #{downsample_forward.1} parent=11 // pred_fallthru
          _
        // Predicated region
        $region17: #{downsample_forward.1} parent=11 // pred_check
          %p198 = pneg %p152
        $region18: #{downsample_forward.1} parent=11 // pred_check_branch
          %200 = sbr.rel (%p198) target = $region20
        $region19: #{downsample_forward.1} parent=11 // pred_region
          _
        $region20: #{downsample_forward.1} parent=11 // pred_fallthru
          _
      $region12: #{downsample_forward.1} parent=5 // pred_fallthru
        _
      %p201 = scmp.lt.s32.totalorder %s14, 2
      // Predicated region
      $region21: #{downsample_forward.1} parent=5 // pred_check
        %p202 = pneg %p201
      $region22: #{downsample_forward.1} parent=5 // pred_check_branch
        %204 = sbr.rel (%p202) target = $region24
      $region23: #{downsample_forward.1} parent=5 // pred_region
        // Predicated region
        $region25: #{downsample_forward.1} parent=23 // pred_check
          %p205 = pneg %p48
        $region26: #{downsample_forward.1} parent=23 // pred_check_branch
          %207 = sbr.rel (%p205) target = $region28
        $region27: #{downsample_forward.1} parent=23 // pred_region
          %s208 = smul.u32 8, %s22
          %p209 = scmp.lt.s32.totalorder %s21, 1
          %s210 = scalar_select %p209, %s21, 1
          %p211 = scmp.lt.s32.totalorder %s208, 7
          %s212 = scalar_select %p211, %s208, 7
          %s213 = smul.addr %s212, 2
          %s214 = smul.addr %s210, 16
          %s215 = sadd.s32 %s213, %s214
          %s216 = smul.addr %s215, 4
          %s217 = scalar_lea.vmem %s0, %s216
          %s218 = smul.u32 8, %s22
        $region28: #{downsample_forward.1} parent=23 // pred_fallthru
          _
        // Predicated region
        $region29: #{downsample_forward.1} parent=23 // pred_check
          %p219 = pneg %p76
        $region30: #{downsample_forward.1} parent=23 // pred_check_branch
          %221 = sbr.rel (%p219) target = $region32
        $region31: #{downsample_forward.1} parent=23 // pred_region
          %s222 = smul.u32 8, %s22
          %p223 = scmp.lt.s32.totalorder %s21, 1
          %s224 = scalar_select %p223, %s21, 1
          %p225 = scmp.lt.s32.totalorder %s222, 7
          %s226 = scalar_select %p225, %s222, 7
          %s227 = smul.addr %s226, 2
          %s228 = smul.addr %s224, 16
          %s229 = sadd.s32 %s227, %s228
          %s230 = smul.addr %s229, 4
          %s231 = scalar_lea.vmem %s1, %s230
          %s232 = smul.u32 8, %s22
        $region32: #{downsample_forward.1} parent=23 // pred_fallthru
          _
        // Predicated region
        $region33: #{downsample_forward.1} parent=23 // pred_check
          %p233 = pneg %p104
        $region34: #{downsample_forward.1} parent=23 // pred_check_branch
          %235 = sbr.rel (%p233) target = $region36
        $region35: #{downsample_forward.1} parent=23 // pred_region
          %p236 = scmp.lt.s32.totalorder %s21, 1
          %s237 = scalar_select %p236, %s21, 1
          %p238 = scmp.lt.s32.totalorder %s22, 0
          %s239 = scalar_select %p238, %s22, 0
          %s240 = smul.addr %s239, 2
          %s241 = smul.addr %s237, 2
          %s242 = sadd.s32 %s240, %s241
          %s243 = smul.addr %s242, 4
          %s244 = scalar_lea.vmem %s2, %s243
        $region36: #{downsample_forward.1} parent=23 // pred_fallthru
          _
      $region24: #{downsample_forward.1} parent=5 // pred_fallthru
        _
      %p245 = scmp.le.s32.totalorder 1, %s14
      %p246 = scmp.lt.s32.totalorder %s14, 3
      %p247 = pnand %p245, %p246
      %p248 = pneg %p247
      // Predicated region
      $region37: #{downsample_forward.1} parent=5 // pred_check
        _
      $region38: #{downsample_forward.1} parent=5 // pred_check_branch
        %250 = sbr.rel (%p247) target = $region40
      $region39: #{downsample_forward.1} parent=5 // pred_region
        %s251 = ssub.s32 %s14, 1
        %s252 = smul.u32 8, %s24
        %p253 = scmp.lt.s32.totalorder %s23, 1
        %s254 = scalar_select %p253, %s23, 1
        %p255 = scmp.lt.s32.totalorder %s252, 7
        %s256 = scalar_select %p255, %s252, 7
        %s257 = smul.addr %s256, 2
        %s258 = smul.addr %s254, 16
        %s259 = sadd.s32 %s257, %s258
        %s260 = smul.addr %s259, 4
        %s261 = scalar_lea.vmem %s0, %s260
        %p262 = pneg %p54
        %p263 = pneg %p51
        %s264 = smul.u32 8, %s24
        %p265 = scmp.lt.s32.totalorder %s23, 1
        %s266 = scalar_select %p265, %s23, 1
        %p267 = scmp.lt.s32.totalorder %s264, 7
        %s268 = scalar_select %p267, %s264, 7
        %s269 = smul.addr %s268, 2
        %s270 = smul.addr %s266, 16
        %s271 = sadd.s32 %s269, %s270
        %s272 = smul.addr %s271, 4
        %s273 = scalar_lea.vmem %s1, %s272
        %p274 = pneg %p82
        %p275 = pneg %p79
        %p276 = scmp.lt.s32.totalorder %s23, 1
        %s277 = scalar_select %p276, %s23, 1
        %p278 = scmp.lt.s32.totalorder %s24, 0
        %s279 = scalar_select %p278, %s24, 0
        %s280 = smul.addr %s279, 2
        %s281 = smul.addr %s277, 2
        %s282 = sadd.s32 %s280, %s281
        %s283 = smul.addr %s282, 4
        %s284 = scalar_lea.vmem %s2, %s283
        %p285 = pneg %p110
        %p286 = pneg %p107
        %p287 = pneg %p131
        %p288 = pneg %p128
        %p289 = pneg %p152
        %p290 = pneg %p149
        %p291 = pneg %p180
        %p292 = pneg %p177
        %s293 = sand.u32 %s167, 1
        %s294 = scalar_lea.sflag [#allocation3], %s293
        %s295 = sand.u32 %s167, 1
        %s296 = smul.addr %s295, 64
        %s297 = scalar_lea.vmem [#allocation2], %s296
        %s298 = smul.u32 8, %s24
        %p299 = scmp.lt.s32.totalorder %s23, 1
        %s300 = scalar_select %p299, %s23, 1
        %p301 = scmp.lt.s32.totalorder %s298, 7
        %s302 = scalar_select %p301, %s298, 7
        %s303 = smul.addr %s302, 2
        %s304 = smul.addr %s300, 16
        %s305 = sadd.s32 %s303, %s304
        %s306 = smul.addr %s305, 4
        %s307 = scalar_lea.vmem %s0, %s306
        %s308 = smul.u32 8, %s24
        %s309 = smul.u32 8, %s24
        %p310 = scmp.lt.s32.totalorder %s23, 1
        %s311 = scalar_select %p310, %s23, 1
        %p312 = scmp.lt.s32.totalorder %s309, 7
        %s313 = scalar_select %p312, %s309, 7
        %s314 = smul.addr %s313, 2
        %s315 = smul.addr %s311, 16
        %s316 = sadd.s32 %s314, %s315
        %s317 = smul.addr %s316, 4
        %s318 = scalar_lea.vmem %s1, %s317
        %s319 = smul.u32 8, %s24
        %p320 = scmp.lt.s32.totalorder %s23, 1
        %s321 = scalar_select %p320, %s23, 1
        %p322 = scmp.lt.s32.totalorder %s24, 0
        %s323 = scalar_select %p322, %s24, 0
        %s324 = smul.addr %s323, 2
        %s325 = smul.addr %s321, 2
        %s326 = sadd.s32 %s324, %s325
        %s327 = smul.addr %s326, 4
        %s328 = scalar_lea.vmem %s2, %s327
        %s329 = smul.u32 8, %s24
        %v331 = vld [vmem:[%s4] sm:$0x1]
        %v332 = vld [vmem:[%s307] sm:$0xff]
        %v333 = vld [vmem:[%s307 + $0x8] sm:$0xff]
        %v334 = vld [vmem:[%s307 + $0x10] sm:$0xff]
        %v335 = vld [vmem:[%s307 + $0x18] sm:$0xff]
        %v336 = vld [vmem:[%s307 + $0x20] sm:$0xff]
        %v337 = vld [vmem:[%s307 + $0x28] sm:$0xff]
        %v338 = vld [vmem:[%s307 + $0x30] sm:$0xff]
        %v339 = vld [vmem:[%s307 + $0x38] sm:$0xff]
        %v340 = vld [vmem:[%s3] sm:$0xf]
        %v341 = vld [vmem:[%s3 + $0x4] sm:$0xf]
        %v342 = vld [vmem:[%s3 + $0x8] sm:$0xf]
        %v343 = vld [vmem:[%s3 + $0xc] sm:$0xf]
        %v344 = vld [vmem:[%s3 + $0x10] sm:$0xf]
        %v345 = vld [vmem:[%s3 + $0x14] sm:$0xf]
        %v346 = vld [vmem:[%s3 + $0x18] sm:$0xf]
        %v347 = vld [vmem:[%s3 + $0x1c] sm:$0xf]
        %v348 = vld [vmem:[%s3 + $0x20] sm:$0xf]
        %v349 = vld [vmem:[%s3 + $0x24] sm:$0xf]
        %v350 = vld [vmem:[%s3 + $0x28] sm:$0xf]
        %v351 = vld [vmem:[%s3 + $0x2c] sm:$0xf]
        %v352 = vld [vmem:[%s3 + $0x30] sm:$0xf]
        %v353 = vld [vmem:[%s3 + $0x34] sm:$0xf]
        %v354 = vld [vmem:[%s3 + $0x38] sm:$0xf]
        %v355 = vld [vmem:[%s3 + $0x3c] sm:$0xf]
        %v356 = vld [vmem:[%s3 + $0x40] sm:$0xf]
        %v357 = vld [vmem:[%s3 + $0x44] sm:$0xf]
        %v358 = vld [vmem:[%s3 + $0x48] sm:$0xf]
        %v359 = vld [vmem:[%s3 + $0x4c] sm:$0xf]
        %v360 = vld [vmem:[%s3 + $0x50] sm:$0xf]
        %v361 = vld [vmem:[%s3 + $0x54] sm:$0xf]
        %v362 = vld [vmem:[%s3 + $0x58] sm:$0xf]
        %v363 = vld [vmem:[%s3 + $0x5c] sm:$0xf]
        %v364 = vld [vmem:[%s318] sm:$0xff]
        %v365 = vld [vmem:[%s318 + $0x8] sm:$0xff]
        %v366 = vld [vmem:[%s318 + $0x10] sm:$0xff]
        %v367 = vld [vmem:[%s318 + $0x18] sm:$0xff]
        %v368 = vld [vmem:[%s318 + $0x20] sm:$0xff]
        %v369 = vld [vmem:[%s318 + $0x28] sm:$0xff]
        %v370 = vld [vmem:[%s318 + $0x30] sm:$0xff]
        %v371 = vld [vmem:[%s318 + $0x38] sm:$0xff]
        %s372 = scalar_lea.vmem %s3, 96
        %v373 = vld [vmem:[%s372] sm:$0xf]
        %v374 = vld [vmem:[%s372 + $0x4] sm:$0xf]
        %v375 = vld [vmem:[%s372 + $0x8] sm:$0xf]
        %v376 = vld [vmem:[%s372 + $0xc] sm:$0xf]
        %v377 = vld [vmem:[%s372 + $0x10] sm:$0xf]
        %v378 = vld [vmem:[%s372 + $0x14] sm:$0xf]
        %v379 = vld [vmem:[%s372 + $0x18] sm:$0xf]
        %v380 = vld [vmem:[%s372 + $0x1c] sm:$0xf]
        %v381 = vld [vmem:[%s372 + $0x20] sm:$0xf]
        %v382 = vld [vmem:[%s372 + $0x24] sm:$0xf]
        %v383 = vld [vmem:[%s372 + $0x28] sm:$0xf]
        %v384 = vld [vmem:[%s372 + $0x2c] sm:$0xf]
        %v385 = vld [vmem:[%s372 + $0x30] sm:$0xf]
        %v386 = vld [vmem:[%s372 + $0x34] sm:$0xf]
        %v387 = vld [vmem:[%s372 + $0x38] sm:$0xf]
        %v388 = vld [vmem:[%s372 + $0x3c] sm:$0xf]
        %v389 = vld [vmem:[%s372 + $0x40] sm:$0xf]
        %v390 = vld [vmem:[%s372 + $0x44] sm:$0xf]
        %v391 = vld [vmem:[%s372 + $0x48] sm:$0xf]
        %v392 = vld [vmem:[%s372 + $0x4c] sm:$0xf]
        %v393 = vld [vmem:[%s372 + $0x50] sm:$0xf]
        %v394 = vld [vmem:[%s372 + $0x54] sm:$0xf]
        %v395 = vld [vmem:[%s372 + $0x58] sm:$0xf]
        %v396 = vld [vmem:[%s372 + $0x5c] sm:$0xf]
        %v405 = vunpack.c.l.b16 %v364
        %v406 = vunpack.c.h.b16 %v364
        %v407 = vunpack.c.l.b16 %v365
        %v408 = vunpack.c.h.b16 %v365
        %v409 = vunpack.c.l.b16 %v366
        %v410 = vunpack.c.h.b16 %v366
        %v411 = vunpack.c.l.b16 %v367
        %v412 = vunpack.c.h.b16 %v367
        %v413 = vunpack.c.l.b16 %v368
        %v414 = vunpack.c.h.b16 %v368
        %v415 = vunpack.c.l.b16 %v369
        %v416 = vunpack.c.h.b16 %v369
        %v417 = vunpack.c.l.b16 %v370
        %v418 = vunpack.c.h.b16 %v370
        %v419 = vunpack.c.l.b16 %v371
        %v420 = vunpack.c.h.b16 %v371
        %v421 = vpack.c.b16 %v407, %v405
        %v422 = vpack.c.b16 %v408, %v406
        %v423 = vpack.c.b16 %v411, %v409
        %v424 = vpack.c.b16 %v412, %v410
        %v425 = vpack.c.b16 %v415, %v413
        %v426 = vpack.c.b16 %v416, %v414
        %v427 = vpack.c.b16 %v419, %v417
        %v428 = vpack.c.b16 %v420, %v418
        %v457 = vunpack.c.l.b16 %v373
        %v458 = vunpack.c.l.b16 %v374
        %v459 = vunpack.c.l.b16 %v375
        %v460 = vunpack.c.l.b16 %v376
        %v461 = vunpack.c.l.b16 %v377
        %v462 = vunpack.c.l.b16 %v378
        %v463 = vunpack.c.l.b16 %v379
        %v464 = vunpack.c.l.b16 %v380
        %v465 = vunpack.c.l.b16 %v381
        %v466 = vunpack.c.l.b16 %v382
        %v467 = vunpack.c.l.b16 %v383
        %v468 = vunpack.c.l.b16 %v384
        %v469 = vunpack.c.l.b16 %v385
        %v470 = vunpack.c.l.b16 %v386
        %v471 = vunpack.c.l.b16 %v387
        %v472 = vunpack.c.l.b16 %v388
        %v473 = vunpack.c.l.b16 %v389
        %v474 = vunpack.c.l.b16 %v390
        %v475 = vunpack.c.l.b16 %v391
        %v476 = vunpack.c.l.b16 %v392
        %v477 = vunpack.c.l.b16 %v393
        %v478 = vunpack.c.l.b16 %v394
        %v479 = vunpack.c.l.b16 %v395
        %v480 = vunpack.c.l.b16 %v396
        %v481 = vpack.c.b16 %v458, %v457
        %v482 = vpack.c.b16 %v460, %v459
        %v483 = vpack.c.b16 %v462, %v461
        %v484 = vpack.c.b16 %v464, %v463
        %v485 = vpack.c.b16 %v466, %v465
        %v486 = vpack.c.b16 %v468, %v467
        %v487 = vpack.c.b16 %v470, %v469
        %v488 = vpack.c.b16 %v472, %v471
        %v489 = vpack.c.b16 %v474, %v473
        %v490 = vpack.c.b16 %v476, %v475
        %v491 = vpack.c.b16 %v478, %v477
        %v492 = vpack.c.b16 %v480, %v479
        %vm505 = vcmask 523264
        %v507 = vsel %vm505, %v422, 0
        %v510 = vsel %vm505, %v424, 0
        %v513 = vsel %vm505, %v426, 0
        %v516 = vsel %vm505, %v428, 0
        %518 = vmatprep.subr.bf16.mxu0 0
        %519 = vmatpush1.bf16.msra.mxu0 %v481
        %520 = vmatprep.subr.bf16.mxu0 0
        %521 = vmatpush1.bf16.msra.mxu0 %v482
        %522 = vmatprep.subr.bf16.mxu0 0
        %523 = vmatpush1.bf16.msra.mxu0 %v483
        %524 = vmatprep.subr.bf16.mxu0 0
        %525 = vmatpush1.bf16.msra.mxu0 %v484
        %526 = vmatprep.subr.bf16.mxu0 0
        %527 = vmatpush1.bf16.msra.mxu0 %v485
        %528 = vmatprep.subr.bf16.mxu0 0
        %529 = vmatpush1.bf16.msra.mxu0 %v486
        %530 = vmatprep.subr.bf16.mxu0 0
        %531 = vmatpush1.bf16.msra.mxu0 %v487
        %532 = vmatprep.subr.bf16.mxu0 0
        %533 = vmatpush1.bf16.msra.mxu0 %v488
        %534 = vmatprep.subr.bf16.mxu0 0
        %535 = vmatpush1.bf16.msra.mxu0 %v489
        %536 = vmatprep.subr.bf16.mxu0 0
        %537 = vmatpush1.bf16.msra.mxu0 %v490
        %538 = vmatprep.subr.bf16.mxu0 0
        %539 = vmatpush1.bf16.msra.mxu0 %v491
        %540 = vmatprep.subr.bf16.mxu0 0
        %541 = vmatpush1.bf16.msra.mxu0 %v492
        %542 = vmatprep.subr.bf16.mxu0 0
        %543 = vmatpush1.bf16.msra.mxu0 0
        %544 = vmatprep.subr.bf16.mxu0 0
        %545 = vmatpush1.bf16.msra.mxu0 0
        %546 = vmatprep.subr.bf16.mxu0 0
        %547 = vmatpush1.bf16.msra.mxu0 0
        %548 = vmatprep.subr.bf16.mxu0 0
        %549 = vmatpush1.bf16.msra.mxu0 0
        %550 = vmatprep.mubr.bf16.mxu0 %v507
        %551 = vmatmul.mubr.bf16.gmra.mrb[0].mxu0 %v421
        %v552 = vpop.f32.mrb[0].mxu0
        %v553 = vadd.f32 0.0, %v552
        %v554 = vpop.f32.mrb[0].mxu0
        %v555 = vpop.f32.mrb[0].mxu0
        %v556 = vadd.f32 0.0, %v555
        %v557 = vpop.f32.mrb[0].mxu0
        %558 = vmatprep.mubr.bf16.mxu0 %v510
        %559 = vmatmul.mubr.bf16.gmra.mrb[0].mxu0 %v423
        %v560 = vpop.f32.mrb[0].mxu0
        %v561 = vadd.f32 0.0, %v560
        %v562 = vpop.f32.mrb[0].mxu0
        %v563 = vpop.f32.mrb[0].mxu0
        %v564 = vadd.f32 0.0, %v563
        %v565 = vpop.f32.mrb[0].mxu0
        %566 = vmatprep.mubr.bf16.mxu0 %v513
        %567 = vmatmul.mubr.bf16.gmra.mrb[0].mxu0 %v425
        %v568 = vpop.f32.mrb[0].mxu0
        %v569 = vadd.f32 0.0, %v568
        %v570 = vpop.f32.mrb[0].mxu0
        %v571 = vpop.f32.mrb[0].mxu0
        %v572 = vadd.f32 0.0, %v571
        %v573 = vpop.f32.mrb[0].mxu0
        %574 = vmatprep.mubr.bf16.mxu0 %v516
        %575 = vmatmul.mubr.bf16.gmra.mrb[0].mxu0 %v427
        %v576 = vpop.f32.mrb[0].mxu0
        %v577 = vadd.f32 0.0, %v576
        %v578 = vpop.f32.mrb[0].mxu0
        %v579 = vpop.f32.mrb[0].mxu0
        %v580 = vadd.f32 0.0, %v579
        %v581 = vpop.f32.mrb[0].mxu0
        %582 = vdwg.mxu0
        %v591 = vunpack.c.l.b16 %v332
        %v592 = vunpack.c.h.b16 %v332
        %v593 = vunpack.c.l.b16 %v333
        %v594 = vunpack.c.h.b16 %v333
        %v595 = vunpack.c.l.b16 %v334
        %v596 = vunpack.c.h.b16 %v334
        %v597 = vunpack.c.l.b16 %v335
        %v598 = vunpack.c.h.b16 %v335
        %v599 = vunpack.c.l.b16 %v336
        %v600 = vunpack.c.h.b16 %v336
        %v601 = vunpack.c.l.b16 %v337
        %v602 = vunpack.c.h.b16 %v337
        %v603 = vunpack.c.l.b16 %v338
        %v604 = vunpack.c.h.b16 %v338
        %v605 = vunpack.c.l.b16 %v339
        %v606 = vunpack.c.h.b16 %v339
        %v607 = vpack.c.b16 %v593, %v591
        %v608 = vpack.c.b16 %v594, %v592
        %v609 = vpack.c.b16 %v597, %v595
        %v610 = vpack.c.b16 %v598, %v596
        %v611 = vpack.c.b16 %v601, %v599
        %v612 = vpack.c.b16 %v602, %v600
        %v613 = vpack.c.b16 %v605, %v603
        %v614 = vpack.c.b16 %v606, %v604
        %v643 = vunpack.c.l.b16 %v340
        %v644 = vunpack.c.l.b16 %v341
        %v645 = vunpack.c.l.b16 %v342
        %v646 = vunpack.c.l.b16 %v343
        %v647 = vunpack.c.l.b16 %v344
        %v648 = vunpack.c.l.b16 %v345
        %v649 = vunpack.c.l.b16 %v346
        %v650 = vunpack.c.l.b16 %v347
        %v651 = vunpack.c.l.b16 %v348
        %v652 = vunpack.c.l.b16 %v349
        %v653 = vunpack.c.l.b16 %v350
        %v654 = vunpack.c.l.b16 %v351
        %v655 = vunpack.c.l.b16 %v352
        %v656 = vunpack.c.l.b16 %v353
        %v657 = vunpack.c.l.b16 %v354
        %v658 = vunpack.c.l.b16 %v355
        %v659 = vunpack.c.l.b16 %v356
        %v660 = vunpack.c.l.b16 %v357
        %v661 = vunpack.c.l.b16 %v358
        %v662 = vunpack.c.l.b16 %v359
        %v663 = vunpack.c.l.b16 %v360
        %v664 = vunpack.c.l.b16 %v361
        %v665 = vunpack.c.l.b16 %v362
        %v666 = vunpack.c.l.b16 %v363
        %v667 = vpack.c.b16 %v644, %v643
        %v668 = vpack.c.b16 %v646, %v645
        %v669 = vpack.c.b16 %v648, %v647
        %v670 = vpack.c.b16 %v650, %v649
        %v671 = vpack.c.b16 %v652, %v651
        %v672 = vpack.c.b16 %v654, %v653
        %v673 = vpack.c.b16 %v656, %v655
        %v674 = vpack.c.b16 %v658, %v657
        %v675 = vpack.c.b16 %v660, %v659
        %v676 = vpack.c.b16 %v662, %v661
        %v677 = vpack.c.b16 %v664, %v663
        %v678 = vpack.c.b16 %v666, %v665
        %v692 = vsel %vm505, %v608, 0
        %v695 = vsel %vm505, %v610, 0
        %v698 = vsel %vm505, %v612, 0
        %v701 = vsel %vm505, %v614, 0
        %703 = vmatprep.subr.bf16.mxu0 0
        %704 = vmatpush1.bf16.msra.mxu0 %v667
        %705 = vmatprep.subr.bf16.mxu0 0
        %706 = vmatpush1.bf16.msra.mxu0 %v668
        %707 = vmatprep.subr.bf16.mxu0 0
        %708 = vmatpush1.bf16.msra.mxu0 %v669
        %709 = vmatprep.subr.bf16.mxu0 0
        %710 = vmatpush1.bf16.msra.mxu0 %v670
        %711 = vmatprep.subr.bf16.mxu0 0
        %712 = vmatpush1.bf16.msra.mxu0 %v671
        %713 = vmatprep.subr.bf16.mxu0 0
        %714 = vmatpush1.bf16.msra.mxu0 %v672
        %715 = vmatprep.subr.bf16.mxu0 0
        %716 = vmatpush1.bf16.msra.mxu0 %v673
        %717 = vmatprep.subr.bf16.mxu0 0
        %718 = vmatpush1.bf16.msra.mxu0 %v674
        %719 = vmatprep.subr.bf16.mxu0 0
        %720 = vmatpush1.bf16.msra.mxu0 %v675
        %721 = vmatprep.subr.bf16.mxu0 0
        %722 = vmatpush1.bf16.msra.mxu0 %v676
        %723 = vmatprep.subr.bf16.mxu0 0
        %724 = vmatpush1.bf16.msra.mxu0 %v677
        %725 = vmatprep.subr.bf16.mxu0 0
        %726 = vmatpush1.bf16.msra.mxu0 %v678
        %727 = vmatprep.subr.bf16.mxu0 0
        %728 = vmatpush1.bf16.msra.mxu0 0
        %729 = vmatprep.subr.bf16.mxu0 0
        %730 = vmatpush1.bf16.msra.mxu0 0
        %731 = vmatprep.subr.bf16.mxu0 0
        %732 = vmatpush1.bf16.msra.mxu0 0
        %733 = vmatprep.subr.bf16.mxu0 0
        %734 = vmatpush1.bf16.msra.mxu0 0
        %735 = vmatprep.mubr.bf16.mxu0 %v692
        %736 = vmatmul.mubr.bf16.gmra.mrb[0].mxu0 %v607
        %v737 = vpop.f32.mrb[0].mxu0
        %v738 = vadd.f32 %v553, %v737
        %v739 = vpop.f32.mrb[0].mxu0
        %v740 = vpop.f32.mrb[0].mxu0
        %v741 = vadd.f32 %v556, %v740
        %v742 = vpop.f32.mrb[0].mxu0
        %743 = vmatprep.mubr.bf16.mxu0 %v695
        %744 = vmatmul.mubr.bf16.gmra.mrb[0].mxu0 %v609
        %v745 = vpop.f32.mrb[0].mxu0
        %v746 = vadd.f32 %v561, %v745
        %v747 = vpop.f32.mrb[0].mxu0
        %v748 = vpop.f32.mrb[0].mxu0
        %v749 = vadd.f32 %v564, %v748
        %v750 = vpop.f32.mrb[0].mxu0
        %751 = vmatprep.mubr.bf16.mxu0 %v698
        %752 = vmatmul.mubr.bf16.gmra.mrb[0].mxu0 %v611
        %v753 = vpop.f32.mrb[0].mxu0
        %v754 = vadd.f32 %v569, %v753
        %v755 = vpop.f32.mrb[0].mxu0
        %v756 = vpop.f32.mrb[0].mxu0
        %v757 = vadd.f32 %v572, %v756
        %v758 = vpop.f32.mrb[0].mxu0
        %759 = vmatprep.mubr.bf16.mxu0 %v701
        %760 = vmatmul.mubr.bf16.gmra.mrb[0].mxu0 %v613
        %v761 = vpop.f32.mrb[0].mxu0
        %v762 = vadd.f32 %v577, %v761
        %v763 = vpop.f32.mrb[0].mxu0
        %v764 = vpop.f32.mrb[0].mxu0
        %v765 = vadd.f32 %v580, %v764
        %v766 = vpop.f32.mrb[0].mxu0
        %767 = vdwg.mxu0
        %v769 = vlaneseq
        %v770 = vshrl.u32 %v769, 7
        %v771 = vsub.s32 0, %v770
        %v772 = vrot.slane %v331, %v771
        %v774 = vadd.f32 %v738, %v772
        %v775 = vadd.f32 %v741, %v772
        %v776 = vadd.f32 %v746, %v772
        %v777 = vadd.f32 %v749, %v772
        %v778 = vadd.f32 %v754, %v772
        %v779 = vadd.f32 %v757, %v772
        %v780 = vadd.f32 %v762, %v772
        %v781 = vadd.f32 %v765, %v772
        %s782 = scalar_lea.vmem %s3, 192
        %v783 = vld [vmem:[%s782] sm:$0xf]
        %v784 = vld [vmem:[%s782 + $0x4] sm:$0xf]
        %v785 = vld [vmem:[%s782 + $0x8] sm:$0xf]
        %v786 = vld [vmem:[%s782 + $0xc] sm:$0xf]
        %v787 = vld [vmem:[%s782 + $0x10] sm:$0xf]
        %v788 = vld [vmem:[%s782 + $0x14] sm:$0xf]
        %v789 = vld [vmem:[%s782 + $0x18] sm:$0xf]
        %v790 = vld [vmem:[%s782 + $0x1c] sm:$0xf]
        %v791 = vld [vmem:[%s782 + $0x20] sm:$0xf]
        %v792 = vld [vmem:[%s782 + $0x24] sm:$0xf]
        %v793 = vld [vmem:[%s782 + $0x28] sm:$0xf]
        %v794 = vld [vmem:[%s782 + $0x2c] sm:$0xf]
        %v795 = vld [vmem:[%s782 + $0x30] sm:$0xf]
        %v796 = vld [vmem:[%s782 + $0x34] sm:$0xf]
        %v797 = vld [vmem:[%s782 + $0x38] sm:$0xf]
        %v798 = vld [vmem:[%s782 + $0x3c] sm:$0xf]
        %v799 = vld [vmem:[%s782 + $0x40] sm:$0xf]
        %v800 = vld [vmem:[%s782 + $0x44] sm:$0xf]
        %v801 = vld [vmem:[%s782 + $0x48] sm:$0xf]
        %v802 = vld [vmem:[%s782 + $0x4c] sm:$0xf]
        %v803 = vld [vmem:[%s782 + $0x50] sm:$0xf]
        %v804 = vld [vmem:[%s782 + $0x54] sm:$0xf]
        %v805 = vld [vmem:[%s782 + $0x58] sm:$0xf]
        %v806 = vld [vmem:[%s782 + $0x5c] sm:$0xf]
        %v807 = vpack.c.b16 %v595, %v593
        %v808 = vpack.c.b16 %v596, %v594
        %v809 = vpack.c.b16 %v599, %v597
        %v810 = vpack.c.b16 %v600, %v598
        %v811 = vpack.c.b16 %v603, %v601
        %v812 = vpack.c.b16 %v604, %v602
        %v813 = vpack.c.b16 %v605, %v605
        %v814 = vpack.c.b16 %v606, %v606
        %v843 = vunpack.c.l.b16 %v783
        %v844 = vunpack.c.l.b16 %v784
        %v845 = vunpack.c.l.b16 %v785
        %v846 = vunpack.c.l.b16 %v786
        %v847 = vunpack.c.l.b16 %v787
        %v848 = vunpack.c.l.b16 %v788
        %v849 = vunpack.c.l.b16 %v789
        %v850 = vunpack.c.l.b16 %v790
        %v851 = vunpack.c.l.b16 %v791
        %v852 = vunpack.c.l.b16 %v792
        %v853 = vunpack.c.l.b16 %v793
        %v854 = vunpack.c.l.b16 %v794
        %v855 = vunpack.c.l.b16 %v795
        %v856 = vunpack.c.l.b16 %v796
        %v857 = vunpack.c.l.b16 %v797
        %v858 = vunpack.c.l.b16 %v798
        %v859 = vunpack.c.l.b16 %v799
        %v860 = vunpack.c.l.b16 %v800
        %v861 = vunpack.c.l.b16 %v801
        %v862 = vunpack.c.l.b16 %v802
        %v863 = vunpack.c.l.b16 %v803
        %v864 = vunpack.c.l.b16 %v804
        %v865 = vunpack.c.l.b16 %v805
        %v866 = vunpack.c.l.b16 %v806
        %v867 = vpack.c.b16 %v844, %v843
        %v868 = vpack.c.b16 %v846, %v845
        %v869 = vpack.c.b16 %v848, %v847
        %v870 = vpack.c.b16 %v850, %v849
        %v871 = vpack.c.b16 %v852, %v851
        %v872 = vpack.c.b16 %v854, %v853
        %v873 = vpack.c.b16 %v856, %v855
        %v874 = vpack.c.b16 %v858, %v857
        %v875 = vpack.c.b16 %v860, %v859
        %v876 = vpack.c.b16 %v862, %v861
        %v877 = vpack.c.b16 %v864, %v863
        %v878 = vpack.c.b16 %v866, %v865
        %v892 = vsel %vm505, %v808, 0
        %v895 = vsel %vm505, %v810, 0
        %v898 = vsel %vm505, %v812, 0
        %v901 = vsel %vm505, %v814, 0
        %903 = vmatprep.subr.bf16.mxu0 0
        %904 = vmatpush1.bf16.msra.mxu0 %v867
        %905 = vmatprep.subr.bf16.mxu0 0
        %906 = vmatpush1.bf16.msra.mxu0 %v868
        %907 = vmatprep.subr.bf16.mxu0 0
        %908 = vmatpush1.bf16.msra.mxu0 %v869
        %909 = vmatprep.subr.bf16.mxu0 0
        %910 = vmatpush1.bf16.msra.mxu0 %v870
        %911 = vmatprep.subr.bf16.mxu0 0
        %912 = vmatpush1.bf16.msra.mxu0 %v871
        %913 = vmatprep.subr.bf16.mxu0 0
        %914 = vmatpush1.bf16.msra.mxu0 %v872
        %915 = vmatprep.subr.bf16.mxu0 0
        %916 = vmatpush1.bf16.msra.mxu0 %v873
        %917 = vmatprep.subr.bf16.mxu0 0
        %918 = vmatpush1.bf16.msra.mxu0 %v874
        %919 = vmatprep.subr.bf16.mxu0 0
        %920 = vmatpush1.bf16.msra.mxu0 %v875
        %921 = vmatprep.subr.bf16.mxu0 0
        %922 = vmatpush1.bf16.msra.mxu0 %v876
        %923 = vmatprep.subr.bf16.mxu0 0
        %924 = vmatpush1.bf16.msra.mxu0 %v877
        %925 = vmatprep.subr.bf16.mxu0 0
        %926 = vmatpush1.bf16.msra.mxu0 %v878
        %927 = vmatprep.subr.bf16.mxu0 0
        %928 = vmatpush1.bf16.msra.mxu0 0
        %929 = vmatprep.subr.bf16.mxu0 0
        %930 = vmatpush1.bf16.msra.mxu0 0
        %931 = vmatprep.subr.bf16.mxu0 0
        %932 = vmatpush1.bf16.msra.mxu0 0
        %933 = vmatprep.subr.bf16.mxu0 0
        %934 = vmatpush1.bf16.msra.mxu0 0
        %935 = vmatprep.mubr.bf16.mxu0 %v892
        %936 = vmatmul.mubr.bf16.gmra.mrb[0].mxu0 %v807
        %v937 = vpop.f32.mrb[0].mxu0
        %v938 = vadd.f32 0.0, %v937
        %v939 = vpop.f32.mrb[0].mxu0
        %v940 = vpop.f32.mrb[0].mxu0
        %v941 = vadd.f32 0.0, %v940
        %v942 = vpop.f32.mrb[0].mxu0
        %943 = vmatprep.mubr.bf16.mxu0 %v895
        %944 = vmatmul.mubr.bf16.gmra.mrb[0].mxu0 %v809
        %v945 = vpop.f32.mrb[0].mxu0
        %v946 = vadd.f32 0.0, %v945
        %v947 = vpop.f32.mrb[0].mxu0
        %v948 = vpop.f32.mrb[0].mxu0
        %v949 = vadd.f32 0.0, %v948
        %v950 = vpop.f32.mrb[0].mxu0
        %951 = vmatprep.mubr.bf16.mxu0 %v898
        %952 = vmatmul.mubr.bf16.gmra.mrb[0].mxu0 %v811
        %v953 = vpop.f32.mrb[0].mxu0
        %v954 = vadd.f32 0.0, %v953
        %v955 = vpop.f32.mrb[0].mxu0
        %v956 = vpop.f32.mrb[0].mxu0
        %v957 = vadd.f32 0.0, %v956
        %v958 = vpop.f32.mrb[0].mxu0
        %959 = vmatprep.mubr.bf16.mxu0 %v901
        %960 = vmatmul.mubr.bf16.gmra.mrb[0].mxu0 %v813
        %v961 = vpop.f32.mrb[0].mxu0
        %v962 = vadd.f32 0.0, %v961
        %v963 = vpop.f32.mrb[0].mxu0
        %v964 = vpop.f32.mrb[0].mxu0
        %v965 = vpop.f32.mrb[0].mxu0
        %966 = vdwg.mxu0
        %v967 = vadd.f32 %v774, %v938
        %v968 = vadd.f32 %v775, %v941
        %v969 = vadd.f32 %v776, %v946
        %v970 = vadd.f32 %v777, %v949
        %v971 = vadd.f32 %v778, %v954
        %v972 = vadd.f32 %v779, %v957
        %v973 = vadd.f32 %v780, %v962
        %974 = vst.msk [vmem:[%s297] sm:$0xff] %vm505, %v967
        %975 = vst.msk [vmem:[%s297 + $0x8] sm:$0xff] %vm505, %v968
        %976 = vst.msk [vmem:[%s297 + $0x10] sm:$0xff] %vm505, %v969
        %977 = vst.msk [vmem:[%s297 + $0x18] sm:$0xff] %vm505, %v970
        %978 = vst.msk [vmem:[%s297 + $0x20] sm:$0xff] %vm505, %v971
        %979 = vst.msk [vmem:[%s297 + $0x28] sm:$0xff] %vm505, %v972
        %980 = vst.msk [vmem:[%s297 + $0x30] sm:$0xff] %vm505, %v973
        %v981 = vld [vmem:[%s328] sm:$0xff]
        %v982 = vld [vmem:[%s782] sm:$0xf]
        %v983 = vld [vmem:[%s782 + $0x4] sm:$0xf]
        %v984 = vld [vmem:[%s782 + $0x8] sm:$0xf]
        %v985 = vld [vmem:[%s782 + $0xc] sm:$0xf]
        %v986 = vld [vmem:[%s782 + $0x10] sm:$0xf]
        %v987 = vld [vmem:[%s782 + $0x14] sm:$0xf]
        %v988 = vld [vmem:[%s782 + $0x18] sm:$0xf]
        %v989 = vld [vmem:[%s782 + $0x1c] sm:$0xf]
        %v990 = vld [vmem:[%s782 + $0x20] sm:$0xf]
        %v991 = vld [vmem:[%s782 + $0x24] sm:$0xf]
        %v992 = vld [vmem:[%s782 + $0x28] sm:$0xf]
        %v993 = vld [vmem:[%s782 + $0x2c] sm:$0xf]
        %v994 = vld [vmem:[%s782 + $0x30] sm:$0xf]
        %v995 = vld [vmem:[%s782 + $0x34] sm:$0xf]
        %v996 = vld [vmem:[%s782 + $0x38] sm:$0xf]
        %v997 = vld [vmem:[%s782 + $0x3c] sm:$0xf]
        %v998 = vld [vmem:[%s782 + $0x40] sm:$0xf]
        %v999 = vld [vmem:[%s782 + $0x44] sm:$0xf]
        %v1000 = vld [vmem:[%s782 + $0x48] sm:$0xf]
        %v1001 = vld [vmem:[%s782 + $0x4c] sm:$0xf]
        %v1002 = vld [vmem:[%s782 + $0x50] sm:$0xf]
        %v1003 = vld [vmem:[%s782 + $0x54] sm:$0xf]
        %v1004 = vld [vmem:[%s782 + $0x58] sm:$0xf]
        %v1005 = vld [vmem:[%s782 + $0x5c] sm:$0xf]
        %v1007 = vunpack.c.l.b16 %v981
        %v1008 = vunpack.c.h.b16 %v981
        %v1009 = vpack.c.b16 %v1007, %v1007
        %v1010 = vpack.c.b16 %v1008, %v1008
        %v1036 = vunpack.c.l.b16 %v982
        %v1037 = vunpack.c.l.b16 %v983
        %v1038 = vunpack.c.l.b16 %v984
        %v1039 = vunpack.c.l.b16 %v985
        %v1040 = vunpack.c.l.b16 %v986
        %v1041 = vunpack.c.l.b16 %v987
        %v1042 = vunpack.c.l.b16 %v988
        %v1043 = vunpack.c.l.b16 %v989
        %v1044 = vunpack.c.l.b16 %v990
        %v1045 = vunpack.c.l.b16 %v991
        %v1046 = vunpack.c.l.b16 %v992
        %v1047 = vunpack.c.l.b16 %v993
        %v1048 = vunpack.c.l.b16 %v994
        %v1049 = vunpack.c.l.b16 %v995
        %v1050 = vunpack.c.l.b16 %v996
        %v1051 = vunpack.c.l.b16 %v997
        %v1052 = vunpack.c.l.b16 %v998
        %v1053 = vunpack.c.l.b16 %v999
        %v1054 = vunpack.c.l.b16 %v1000
        %v1055 = vunpack.c.l.b16 %v1001
        %v1056 = vunpack.c.l.b16 %v1002
        %v1057 = vunpack.c.l.b16 %v1003
        %v1058 = vunpack.c.l.b16 %v1004
        %v1059 = vunpack.c.l.b16 %v1005
        %v1060 = vpack.c.b16 %v1037, %v1036
        %v1061 = vpack.c.b16 %v1039, %v1038
        %v1062 = vpack.c.b16 %v1041, %v1040
        %v1063 = vpack.c.b16 %v1043, %v1042
        %v1064 = vpack.c.b16 %v1045, %v1044
        %v1065 = vpack.c.b16 %v1047, %v1046
        %v1066 = vpack.c.b16 %v1049, %v1048
        %v1067 = vpack.c.b16 %v1051, %v1050
        %v1068 = vpack.c.b16 %v1053, %v1052
        %v1069 = vpack.c.b16 %v1055, %v1054
        %v1070 = vpack.c.b16 %v1057, %v1056
        %v1071 = vpack.c.b16 %v1059, %v1058
        %v1085 = vsel %vm505, %v1010, 0
        %1087 = vmatprep.subr.bf16.mxu0 0
        %1088 = vmatpush1.bf16.msra.mxu0 %v1060
        %1089 = vmatprep.subr.bf16.mxu0 0
        %1090 = vmatpush1.bf16.msra.mxu0 %v1061
        %1091 = vmatprep.subr.bf16.mxu0 0
        %1092 = vmatpush1.bf16.msra.mxu0 %v1062
        %1093 = vmatprep.subr.bf16.mxu0 0
        %1094 = vmatpush1.bf16.msra.mxu0 %v1063
        %1095 = vmatprep.subr.bf16.mxu0 0
        %1096 = vmatpush1.bf16.msra.mxu0 %v1064
        %1097 = vmatprep.subr.bf16.mxu0 0
        %1098 = vmatpush1.bf16.msra.mxu0 %v1065
        %1099 = vmatprep.subr.bf16.mxu0 0
        %1100 = vmatpush1.bf16.msra.mxu0 %v1066
        %1101 = vmatprep.subr.bf16.mxu0 0
        %1102 = vmatpush1.bf16.msra.mxu0 %v1067
        %1103 = vmatprep.subr.bf16.mxu0 0
        %1104 = vmatpush1.bf16.msra.mxu0 %v1068
        %1105 = vmatprep.subr.bf16.mxu0 0
        %1106 = vmatpush1.bf16.msra.mxu0 %v1069
        %1107 = vmatprep.subr.bf16.mxu0 0
        %1108 = vmatpush1.bf16.msra.mxu0 %v1070
        %1109 = vmatprep.subr.bf16.mxu0 0
        %1110 = vmatpush1.bf16.msra.mxu0 %v1071
        %1111 = vmatprep.subr.bf16.mxu0 0
        %1112 = vmatpush1.bf16.msra.mxu0 0
        %1113 = vmatprep.subr.bf16.mxu0 0
        %1114 = vmatpush1.bf16.msra.mxu0 0
        %1115 = vmatprep.subr.bf16.mxu0 0
        %1116 = vmatpush1.bf16.msra.mxu0 0
        %1117 = vmatprep.subr.bf16.mxu0 0
        %1118 = vmatpush1.bf16.msra.mxu0 0
        %1119 = vmatprep.mubr.bf16.mxu0 %v1085
        %1120 = vmatmul.mubr.bf16.gmra.mrb[0].mxu0 %v1009
        %v1121 = vpop.f32.mrb[0].mxu0
        %v1122 = vadd.f32 0.0, %v1121
        %v1123 = vpop.f32.mrb[0].mxu0
        %v1124 = vpop.f32.mrb[0].mxu0
        %v1125 = vpop.f32.mrb[0].mxu0
        %1126 = vdwg.mxu0
        %v1127 = vadd.f32 %v781, %v1122
        %1128 = vst.msk [vmem:[%s297 + $0x38] sm:$0xff] %vm505, %v1127
        %s1129 = sand.u32 %s167, 1
        %s1130 = scalar_lea.sflag [#allocation3], %s1129
        %s1131 = sand.u32 %s167, 1
        %s1132 = smul.addr %s1131, 64
        %s1133 = scalar_lea.vmem [#allocation2], %s1132
        // Predicated region
        $region41: #{downsample_forward.1} parent=39 // pred_check
          %p1134 = pneg %p177
        $region42: #{downsample_forward.1} parent=39 // pred_check_branch
          %1136 = sbr.rel (%p1134) target = $region44
        $region43: #{downsample_forward.1} parent=39 // pred_region
          %s1137 = smul.u32 8, %s24
          %s1139 = ssub.s32 1024, 1024
          %1140 = vsyncadd %s1130, %s1139
          %s1141 = smul.addr %s23, 8
          %s1142 = sadd.s32 %s1137, %s1141
          %s1143 = smul.addr %s1142, 128
          %s1144 = scalar_lea.hbm %s5, %s1143
          %s1145 = sshll.u32 %s1133, 4
          %s1146 = int_to_ptr.vmem [resolvable:$true] %s1145
          %1151 = dma.vmem_to_hbm [thread:$0]  %s1146, 1024, %s1144, %s1130, 128, 128, 8
        $region44: #{downsample_forward.1} parent=39 // pred_fallthru
          _
      $region40: #{downsample_forward.1} parent=5 // pred_fallthru
        _
      %p1152 = scmp.le.s32.totalorder 2, %s14
      // Predicated region
      $region45: #{downsample_forward.1} parent=5 // pred_check
        %p1153 = pneg %p1152
      $region46: #{downsample_forward.1} parent=5 // pred_check_branch
        %1155 = sbr.rel (%p1153) target = $region48
      $region47: #{downsample_forward.1} parent=5 // pred_region
        %s1156 = ssub.s32 %s14, 2
        // Predicated region
        $region49: #{downsample_forward.1} parent=47 // pred_check
          %p1157 = pneg %p183
        $region50: #{downsample_forward.1} parent=47 // pred_check_branch
          %1159 = sbr.rel (%p1157) target = $region52
        $region51: #{downsample_forward.1} parent=47 // pred_region
          %s1160 = sand.u32 %s168, 1
          %s1161 = scalar_lea.sflag [#allocation3], %s1160
          %s1162 = sand.u32 %s168, 1
          %s1163 = smul.addr %s1162, 64
          %s1164 = scalar_lea.vmem [#allocation2], %s1163
          %1165 = dma.done %s1161, 1024
        $region52: #{downsample_forward.1} parent=47 // pred_fallthru
          _
      $region48: #{downsample_forward.1} parent=5 // pred_fallthru
        _
    $region6: #{downsample_forward.1} parent=1 // loop_footer
      %s18 = sadd.s32 1, %s14
    $region7: #{downsample_forward.1} parent=1 // loop_footer_branch
      %13 = sbr.rel target = $region3
    $region8: #{downsample_forward.1} parent=1 // loop_exit
      _
    %1166 = vsyncpa [#allocation3], 1
    %s1167 = scalar_lea.sflag [#allocation3], 1
    %1168 = vsyncpa %s1167, 1

</llo_original>
